<compile_context>
chip_gen: v6e
topology: v6e:2x2x1
jax: 0.10.0
libtpu: 0.0.40
codegen_flags: <defaults>
</compile_context>

<pallas_src>
from functools import partial

import jax
import jax.numpy as jnp
from jax import lax
from jax.experimental import pallas as pl
from jax.experimental.pallas import tpu as pltpu

EPS = 1e-5


def simple_nn_kernel(x_ref, w1_ref, w2_ref, wh_ref, pk_ref, o_ref,
                     s1_ref, q1_ref, s2_ref, q2_ref,
                     sc1_ref, sh1_ref, sc2_ref, sh2_ref,
                     *, n1, n2, inv_batch):
    # Grid: (pass, batch_tile).  pass 0 = layer-1 BN stats, pass 1 = layer-2 BN
    # stats, pass 2 = emit output.  Batch sits on the lane axis everywhere.
    p = pl.program_id(0)
    t = pl.program_id(1)
    nt = pl.num_programs(1)

    # Packed per-feature parameter columns: [b1, g1, be1, b2, g2, be2, bh, pad].
    b1 = pk_ref[:n1, 0:1]
    g1 = pk_ref[:n1, 1:2]
    be1 = pk_ref[:n1, 2:3]
    b2 = pk_ref[:n2, 3:4]
    g2 = pk_ref[:n2, 4:5]
    be2 = pk_ref[:n2, 5:6]
    bh = pk_ref[0:1, 6:7]                      # (1, 1) head bias

    x = x_ref[...]                             # (n0, Bt) f32, batch on lanes

    # Layer-1 pre-BN activation (recomputed each pass; K is tiny, recompute is
    # cheaper than spilling activations to HBM).
    a1 = jnp.tanh(jnp.dot(w1_ref[...], x, preferred_element_type=jnp.float32) + b1)

    @pl.when(p == 0)
    def _stats_layer1():
        @pl.when(t == 0)
        def _():
            s1_ref[...] = jnp.zeros_like(s1_ref)
            q1_ref[...] = jnp.zeros_like(q1_ref)
        s1_ref[...] += jnp.sum(a1, axis=-1, keepdims=True)
        q1_ref[...] += jnp.sum(a1 * a1, axis=-1, keepdims=True)

        @pl.when(t == nt - 1)
        def _():
            mean = s1_ref[...] * inv_batch
            var = q1_ref[...] * inv_batch - mean * mean   # biased variance
            scale = g1 * lax.rsqrt(var + EPS)
            sc1_ref[...] = scale
            sh1_ref[...] = be1 - mean * scale

    @pl.when(p >= 1)
    def _after_layer1():
        h1 = a1 * sc1_ref[...] + sh1_ref[...]             # folded BN affine
        a2 = jnp.tanh(jnp.dot(w2_ref[...], h1,
                              preferred_element_type=jnp.float32) + b2)

        @pl.when(p == 1)
        def _stats_layer2():
            @pl.when(t == 0)
            def _():
                s2_ref[...] = jnp.zeros_like(s2_ref)
                q2_ref[...] = jnp.zeros_like(q2_ref)
            s2_ref[...] += jnp.sum(a2, axis=-1, keepdims=True)
            q2_ref[...] += jnp.sum(a2 * a2, axis=-1, keepdims=True)

            @pl.when(t == nt - 1)
            def _():
                mean = s2_ref[...] * inv_batch
                var = q2_ref[...] * inv_batch - mean * mean
                scale = g2 * lax.rsqrt(var + EPS)
                sc2_ref[...] = scale
                sh2_ref[...] = be2 - mean * scale

        @pl.when(p == 2)
        def _emit():
            h2 = a2 * sc2_ref[...] + sh2_ref[...]
            # Head: (1, n2) @ (n2, Bt) -> lane-dense (1, Bt) output.
            y = jnp.dot(wh_ref[...], h2, preferred_element_type=jnp.float32) + bh
            # Exact sigmoid via one EUP tanh: sigmoid(y) = 0.5*(1 + tanh(y/2)).
            o_ref[...] = 0.5 * (1.0 + jnp.tanh(0.5 * y))


def _pack_param_columns(params, n1, n2):
    """Pack the 7 tiny per-feature vectors into one (max_n, 8) f32 column array."""
    max_n = max(n1, n2, 1)

    def col(v):
        v = v.reshape(-1).astype(jnp.float32)
        return jnp.pad(v, (0, max_n - v.shape[0]))

    cols = [col(params["b1"]), col(params["g1"]), col(params["be1"]),
            col(params["b2"]), col(params["g2"]), col(params["be2"]),
            col(params["bh"]), jnp.zeros((max_n,), jnp.float32)]
    return jnp.stack(cols, axis=1)                         # (max_n, 8)


def simple_nn_forward(x, params, *, batch_tile=None):
    """x: [B, sizes[0]] float32.  Returns [B * sizes[-1]] float32 (== view(-1))."""
    B, n0 = x.shape
    n1 = params["w1"].shape[0]                             # torch [out, in] layout
    n2 = params["w2"].shape[0]
    out_dim = params["wh"].shape[0]
    # Head with out_dim == 1 (as in the reference script); wider heads would use
    # an (out_dim, n2) @ (n2, Bt) matmul with an (out_dim, B) output slab.
    assert out_dim == 1, "this kernel specializes the sizes[-1] == 1 head"

    if batch_tile is None:
        batch_tile = 512 if B % 512 == 0 else B
    assert B % batch_tile == 0, "batch size must be a multiple of the batch tile"
    assert batch_tile == B or batch_tile % 128 == 0, "batch tile must be lane-aligned"
    nt = B // batch_tile

    x_t = x.T                                              # (n0, B): batch on lanes
    packed = _pack_param_columns(params, n1, n2)
    wh = params["wh"].astype(jnp.float32)                  # (1, n2)

    out = pl.pallas_call(
        partial(simple_nn_kernel, n1=n1, n2=n2, inv_batch=1.0 / float(B)),
        out_shape=jax.ShapeDtypeStruct((1, B), jnp.float32),   # lane-dense slab
        grid_spec=pltpu.PrefetchScalarGridSpec(
            num_scalar_prefetch=0,
            grid=(3, nt),                                   # (pass, batch tile)
            in_specs=[
                pl.BlockSpec((n0, batch_tile), lambda p, t: (0, t)),   # x^T tile
                pl.BlockSpec((n1, n0), lambda p, t: (0, 0)),           # W1 (resident)
                pl.BlockSpec((n2, n1), lambda p, t: (0, 0)),           # W2 (resident)
                pl.BlockSpec((1, n2), lambda p, t: (0, 0)),            # Wh (resident)
                pl.BlockSpec(packed.shape, lambda p, t: (0, 0)),       # packed params
            ],
            out_specs=pl.BlockSpec((1, batch_tile), lambda p, t: (0, t)),
            scratch_shapes=[
                pltpu.VMEM((n1, 1), jnp.float32),   # sum   (layer 1)
                pltpu.VMEM((n1, 1), jnp.float32),   # sumsq (layer 1)
                pltpu.VMEM((n2, 1), jnp.float32),   # sum   (layer 2)
                pltpu.VMEM((n2, 1), jnp.float32),   # sumsq (layer 2)
                pltpu.VMEM((n1, 1), jnp.float32),   # BN scale (layer 1)
                pltpu.VMEM((n1, 1), jnp.float32),   # BN shift (layer 1)
                pltpu.VMEM((n2, 1), jnp.float32),   # BN scale (layer 2)
                pltpu.VMEM((n2, 1), jnp.float32),   # BN shift (layer 2)
            ],
        ),
        compiler_params=pltpu.CompilerParams(
            # Both axes carry the BN-stats reduction / pass dependency;
            # see TODO(synk) above for the v7x megacore-parallel variant.
            dimension_semantics=("arbitrary", "arbitrary")),
    )(x_t, params["w1"], params["w2"], wh, packed)
    return out.reshape(-1)


def init_params(key, sizes):
    """Deterministic init.  Weights kept in torch [out, in] layout so the kernel
    computes h = W @ x^T directly (batch on the lane axis)."""
    n0, n1, n2, n_out = sizes
    ks = jax.random.split(key, 3)

    def lin(k, fan_in, fan_out):
        bound = 1.0 / jnp.sqrt(fan_in)
        kw, kb = jax.random.split(k)
        w = jax.random.uniform(kw, (fan_out, fan_in), jnp.float32, -bound, bound)
        b = jax.random.uniform(kb, (fan_out,), jnp.float32, -bound, bound)
        return w, b

    w1, b1 = lin(ks[0], n0, n1)
    w2, b2 = lin(ks[1], n1, n2)
    wh, bh = lin(ks[2], n2, n_out)

    return {
        "w1": w1, "b1": b1,
        "g1": jnp.ones((n1,), jnp.float32), "be1": jnp.zeros((n1,), jnp.float32),
        "w2": w2, "b2": b2,
        "g2": jnp.ones((n2,), jnp.float32), "be2": jnp.zeros((n2,), jnp.float32),
        "wh": wh, "bh": bh,
    }


def _batchnorm_ref(h, gamma, beta):
    mean = jnp.mean(h, axis=0, keepdims=True)
    var = jnp.mean(jnp.square(h - mean), axis=0, keepdims=True)
    return gamma * (h - mean) * lax.rsqrt(var + EPS) + beta


def reference_forward(x, p):
    """Pure-JAX reference (training-mode BN, exact sigmoid)."""
    h = jnp.tanh(x @ p["w1"].T + p["b1"])
    h = _batchnorm_ref(h, p["g1"], p["be1"])
    h = jnp.tanh(h @ p["w2"].T + p["b2"])
    h = _batchnorm_ref(h, p["g2"], p["be2"])
    y = h @ p["wh"].T + p["bh"]
    return jax.nn.sigmoid(y).reshape(-1)


if __name__ == "__main__":
    sizes = [16, 32, 32, 1]    # 2 hidden blocks (Linear+Tanh+BN), head Linear(32, 1)

    key = jax.random.PRNGKey(0)
    k_x, k_p, k_x2 = jax.random.split(key, 3)
    params = init_params(k_p, sizes)

    # --- small demo batch: single batch tile ---
    B = 8
    x = jax.random.normal(k_x, (B, sizes[0]), jnp.float32)
    out = simple_nn_forward(x, params)
    jax.block_until_ready(out)
    assert out.shape == (B * sizes[-1],), out.shape
    assert bool(jnp.all((out >= 0.0) & (out <= 1.0)))
    ref = reference_forward(x, params)
    err = float(jnp.max(jnp.abs(out - ref)))
    assert bool(jnp.allclose(out, ref, atol=1e-5, rtol=1e-5)), f"max abs err {err}"

    # --- multi-tile batch grid (2 lane-aligned tiles of 128): exercises the
    #     cross-tile two-pass BN statistics path ---
    B2 = 256
    x2 = jax.random.normal(k_x2, (B2, sizes[0]), jnp.float32)
    out2 = simple_nn_forward(x2, params, batch_tile=128)
    jax.block_until_ready(out2)
    assert out2.shape == (B2 * sizes[-1],), out2.shape
    ref2 = reference_forward(x2, params)
    err2 = float(jnp.max(jnp.abs(out2 - ref2)))
    assert bool(jnp.allclose(out2, ref2, atol=1e-5, rtol=1e-5)), f"max abs err {err2}"

    print("KERNEL_OK")
</pallas_src>

<mosaic_0001>
module attributes {stable_mosaic.version = 11 : i64} {
  func.func @simple_nn_kernel(%arg0: i32, %arg1: i32, %arg2: memref<16x8xf32, #tpu.memory_space<vmem>>, %arg3: memref<32x16xf32, #tpu.memory_space<vmem>>, %arg4: memref<32x32xf32, #tpu.memory_space<vmem>>, %arg5: memref<1x32xf32, #tpu.memory_space<vmem>>, %arg6: memref<32x8xf32, #tpu.memory_space<vmem>>, %arg7: memref<1x8xf32, #tpu.memory_space<vmem>>, %arg8: memref<32x1xf32, #tpu.memory_space<vmem>>, %arg9: memref<32x1xf32, #tpu.memory_space<vmem>>, %arg10: memref<32x1xf32, #tpu.memory_space<vmem>>, %arg11: memref<32x1xf32, #tpu.memory_space<vmem>>, %arg12: memref<32x1xf32, #tpu.memory_space<vmem>>, %arg13: memref<32x1xf32, #tpu.memory_space<vmem>>, %arg14: memref<32x1xf32, #tpu.memory_space<vmem>>, %arg15: memref<32x1xf32, #tpu.memory_space<vmem>>) attributes {dimension_semantics = [#tpu.dimension_semantics<arbitrary>, #tpu.dimension_semantics<arbitrary>], iteration_bounds = array<i64: 3, 1>, scalar_prefetch = 0 : i64, scratch_operands = 8 : i64, tpu.core_type = #tpu.core_type<tc>, window_params = [{transform_indices = @transform_0, window_bounds = array<i64: 16, 8>}, {pipeline_mode = #tpu.pipeline_mode<synchronous>, transform_indices = @transform_1, window_bounds = array<i64: 32, 16>}, {pipeline_mode = #tpu.pipeline_mode<synchronous>, transform_indices = @transform_2, window_bounds = array<i64: 32, 32>}, {pipeline_mode = #tpu.pipeline_mode<synchronous>, transform_indices = @transform_3, window_bounds = array<i64: 1, 32>}, {pipeline_mode = #tpu.pipeline_mode<synchronous>, transform_indices = @transform_4, window_bounds = array<i64: 32, 8>}, {transform_indices = @transform_5, window_bounds = array<i64: 1, 8>}]} {
    %c0 = arith.constant 0 : index
    %c0_0 = arith.constant 0 : index
    %0 = vector.load %arg6[%c0, %c0_0] : memref<32x8xf32, #tpu.memory_space<vmem>>, vector<32x1xf32>
    %c0_1 = arith.constant 0 : index
    %c1 = arith.constant 1 : index
    %1 = vector.load %arg6[%c0_1, %c1] : memref<32x8xf32, #tpu.memory_space<vmem>>, vector<32x1xf32>
    %c0_2 = arith.constant 0 : index
    %c2 = arith.constant 2 : index
    %2 = vector.load %arg6[%c0_2, %c2] : memref<32x8xf32, #tpu.memory_space<vmem>>, vector<32x1xf32>
    %c0_3 = arith.constant 0 : index
    %c3 = arith.constant 3 : index
    %3 = vector.load %arg6[%c0_3, %c3] : memref<32x8xf32, #tpu.memory_space<vmem>>, vector<32x1xf32>
    %c0_4 = arith.constant 0 : index
    %c4 = arith.constant 4 : index
    %4 = vector.load %arg6[%c0_4, %c4] : memref<32x8xf32, #tpu.memory_space<vmem>>, vector<32x1xf32>
    %c0_5 = arith.constant 0 : index
    %c5 = arith.constant 5 : index
    %5 = vector.load %arg6[%c0_5, %c5] : memref<32x8xf32, #tpu.memory_space<vmem>>, vector<32x1xf32>
    %c0_6 = arith.constant 0 : index
    %c6 = arith.constant 6 : index
    %6 = vector.load %arg6[%c0_6, %c6] : memref<32x8xf32, #tpu.memory_space<vmem>>, vector<1x1xf32>
    %c0_7 = arith.constant 0 : index
    %c0_8 = arith.constant 0 : index
    %7 = vector.load %arg2[%c0_7, %c0_8] : memref<16x8xf32, #tpu.memory_space<vmem>>, vector<16x8xf32>
    %c0_9 = arith.constant 0 : index
    %c0_10 = arith.constant 0 : index
    %8 = vector.load %arg3[%c0_9, %c0_10] : memref<32x16xf32, #tpu.memory_space<vmem>>, vector<32x16xf32>
    %cst = arith.constant dense<0.000000e+00> : vector<32x8xf32>
    %9 = tpu.matmul %8, %7, %cst {dimension_numbers = #tpu.dot_dimension_numbers<[1], [0], [0], [1], [0, 0, 1, 1], [], []>} : vector<32x16xf32>, vector<16x8xf32>, vector<32x8xf32> -> vector<32x8xf32>
    %10 = vector.broadcast %0 : vector<32x1xf32> to vector<32x8xf32>
    %11 = arith.addf %9, %10 : vector<32x8xf32>
    %12 = math.tanh %11 : vector<32x8xf32>
    %c0_i32 = arith.constant 0 : i32
    %13 = arith.cmpi eq, %arg0, %c0_i32 : i32
    %14 = arith.extui %13 : i1 to i32
    %c0_i32_11 = arith.constant 0 : i32
    %15 = arith.cmpi ne, %14, %c0_i32_11 : i32
    scf.if %15 {
      %c0_i32_13 = arith.constant 0 : i32
      %19 = arith.cmpi eq, %arg1, %c0_i32_13 : i32
      %20 = arith.extui %19 : i1 to i32
      %c0_i32_14 = arith.constant 0 : i32
      %21 = arith.cmpi ne, %20, %c0_i32_14 : i32
      scf.if %21 {
        %cst_27 = arith.constant 0.000000e+00 : f32
        %36 = vector.broadcast %cst_27 : f32 to vector<32x1xf32>
        %c0_28 = arith.constant 0 : index
        %c0_29 = arith.constant 0 : index
        %37 = vector.load %arg8[%c0_28, %c0_29] : memref<32x1xf32, #tpu.memory_space<vmem>>, vector<32x1xf32>
        tpu.vector_store %arg8[%c0_28, %c0_29], %36 {strides = array<i32>} : memref<32x1xf32, #tpu.memory_space<vmem>>, vector<32x1xf32>,
        %cst_30 = arith.constant 0.000000e+00 : f32
        %38 = vector.broadcast %cst_30 : f32 to vector<32x1xf32>
        %c0_31 = arith.constant 0 : index
        %c0_32 = arith.constant 0 : index
        %39 = vector.load %arg9[%c0_31, %c0_32] : memref<32x1xf32, #tpu.memory_space<vmem>>, vector<32x1xf32>
        tpu.vector_store %arg9[%c0_31, %c0_32], %38 {strides = array<i32>} : memref<32x1xf32, #tpu.memory_space<vmem>>, vector<32x1xf32>,
      } else {
      }
      %c0_15 = arith.constant 0 : index
      %c0_16 = arith.constant 0 : index
      %22 = vector.load %arg8[%c0_15, %c0_16] : memref<32x1xf32, #tpu.memory_space<vmem>>, vector<32x1xf32>
      %cst_17 = arith.constant dense<0.000000e+00> : vector<32xf32>
      %23 = vector.multi_reduction <add>, %12, %cst_17 [1] : vector<32x8xf32> to vector<32xf32>
      %24 = vector.shape_cast %23 : vector<32xf32> to vector<32x1xf32>
      %25 = arith.addf %22, %24 : vector<32x1xf32>
      %c0_18 = arith.constant 0 : index
      %c0_19 = arith.constant 0 : index
      %26 = vector.load %arg8[%c0_18, %c0_19] : memref<32x1xf32, #tpu.memory_space<vmem>>, vector<32x1xf32>
      tpu.vector_store %arg8[%c0_18, %c0_19], %25 {strides = array<i32>} : memref<32x1xf32, #tpu.memory_space<vmem>>, vector<32x1xf32>,
      %c0_20 = arith.constant 0 : index
      %c0_21 = arith.constant 0 : index
      %27 = vector.load %arg9[%c0_20, %c0_21] : memref<32x1xf32, #tpu.memory_space<vmem>>, vector<32x1xf32>
      %28 = arith.mulf %12, %12 : vector<32x8xf32>
      %cst_22 = arith.constant dense<0.000000e+00> : vector<32xf32>
      %29 = vector.multi_reduction <add>, %28, %cst_22 [1] : vector<32x8xf32> to vector<32xf32>
      %30 = vector.shape_cast %29 : vector<32xf32> to vector<32x1xf32>
      %31 = arith.addf %27, %30 : vector<32x1xf32>
      %c0_23 = arith.constant 0 : index
      %c0_24 = arith.constant 0 : index
      %32 = vector.load %arg9[%c0_23, %c0_24] : memref<32x1xf32, #tpu.memory_space<vmem>>, vector<32x1xf32>
      tpu.vector_store %arg9[%c0_23, %c0_24], %31 {strides = array<i32>} : memref<32x1xf32, #tpu.memory_space<vmem>>, vector<32x1xf32>,
      %c0_i32_25 = arith.constant 0 : i32
      %33 = arith.cmpi eq, %arg1, %c0_i32_25 : i32
      %34 = arith.extui %33 : i1 to i32
      %c0_i32_26 = arith.constant 0 : i32
      %35 = arith.cmpi ne, %34, %c0_i32_26 : i32
      scf.if %35 {
        %c0_27 = arith.constant 0 : index
        %c0_28 = arith.constant 0 : index
        %36 = vector.load %arg8[%c0_27, %c0_28] : memref<32x1xf32, #tpu.memory_space<vmem>>, vector<32x1xf32>
        %cst_29 = arith.constant 1.250000e-01 : f32
        %37 = vector.broadcast %cst_29 : f32 to vector<32x1xf32>
        %38 = arith.mulf %36, %37 : vector<32x1xf32>
        %c0_30 = arith.constant 0 : index
        %c0_31 = arith.constant 0 : index
        %39 = vector.load %arg9[%c0_30, %c0_31] : memref<32x1xf32, #tpu.memory_space<vmem>>, vector<32x1xf32>
        %cst_32 = arith.constant 1.250000e-01 : f32
        %40 = vector.broadcast %cst_32 : f32 to vector<32x1xf32>
        %41 = arith.mulf %39, %40 : vector<32x1xf32>
        %42 = arith.mulf %38, %38 : vector<32x1xf32>
        %43 = arith.subf %41, %42 : vector<32x1xf32>
        %cst_33 = arith.constant 9.99999974E-6 : f32
        %44 = vector.broadcast %cst_33 : f32 to vector<32x1xf32>
        %45 = arith.addf %43, %44 : vector<32x1xf32>
        %46 = math.rsqrt %45 : vector<32x1xf32>
        %47 = arith.mulf %1, %46 : vector<32x1xf32>
        %c0_34 = arith.constant 0 : index
        %c0_35 = arith.constant 0 : index
        %48 = vector.load %arg12[%c0_34, %c0_35] : memref<32x1xf32, #tpu.memory_space<vmem>>, vector<32x1xf32>
        tpu.vector_store %arg12[%c0_34, %c0_35], %47 {strides = array<i32>} : memref<32x1xf32, #tpu.memory_space<vmem>>, vector<32x1xf32>,
        %49 = arith.mulf %38, %47 : vector<32x1xf32>
        %50 = arith.subf %2, %49 : vector<32x1xf32>
        %c0_36 = arith.constant 0 : index
        %c0_37 = arith.constant 0 : index
        %51 = vector.load %arg13[%c0_36, %c0_37] : memref<32x1xf32, #tpu.memory_space<vmem>>, vector<32x1xf32>
        tpu.vector_store %arg13[%c0_36, %c0_37], %50 {strides = array<i32>} : memref<32x1xf32, #tpu.memory_space<vmem>>, vector<32x1xf32>,
      } else {
      }
    } else {
    }
    %c1_i32 = arith.constant 1 : i32
    %16 = arith.cmpi sge, %arg0, %c1_i32 : i32
    %17 = arith.extui %16 : i1 to i32
    %c0_i32_12 = arith.constant 0 : i32
    %18 = arith.cmpi ne, %17, %c0_i32_12 : i32
    scf.if %18 {
      %c0_13 = arith.constant 0 : index
      %c0_14 = arith.constant 0 : index
      %19 = vector.load %arg12[%c0_13, %c0_14] : memref<32x1xf32, #tpu.memory_space<vmem>>, vector<32x1xf32>
      %20 = vector.broadcast %19 : vector<32x1xf32> to vector<32x8xf32>
      %21 = arith.mulf %12, %20 : vector<32x8xf32>
      %c0_15 = arith.constant 0 : index
      %c0_16 = arith.constant 0 : index
      %22 = vector.load %arg13[%c0_15, %c0_16] : memref<32x1xf32, #tpu.memory_space<vmem>>, vector<32x1xf32>
      %23 = vector.broadcast %22 : vector<32x1xf32> to vector<32x8xf32>
      %24 = arith.addf %21, %23 : vector<32x8xf32>
      %c0_17 = arith.constant 0 : index
      %c0_18 = arith.constant 0 : index
      %25 = vector.load %arg4[%c0_17, %c0_18] : memref<32x32xf32, #tpu.memory_space<vmem>>, vector<32x32xf32>
      %cst_19 = arith.constant dense<0.000000e+00> : vector<32x8xf32>
      %26 = tpu.matmul %25, %24, %cst_19 {dimension_numbers = #tpu.dot_dimension_numbers<[1], [0], [0], [1], [0, 0, 1, 1], [], []>} : vector<32x32xf32>, vector<32x8xf32>, vector<32x8xf32> -> vector<32x8xf32>
      %27 = vector.broadcast %3 : vector<32x1xf32> to vector<32x8xf32>
      %28 = arith.addf %26, %27 : vector<32x8xf32>
      %29 = math.tanh %28 : vector<32x8xf32>
      %c1_i32_20 = arith.constant 1 : i32
      %30 = arith.cmpi eq, %arg0, %c1_i32_20 : i32
      %31 = arith.extui %30 : i1 to i32
      %c0_i32_21 = arith.constant 0 : i32
      %32 = arith.cmpi ne, %31, %c0_i32_21 : i32
      scf.if %32 {
        %c0_i32_23 = arith.constant 0 : i32
        %36 = arith.cmpi eq, %arg1, %c0_i32_23 : i32
        %37 = arith.extui %36 : i1 to i32
        %c0_i32_24 = arith.constant 0 : i32
        %38 = arith.cmpi ne, %37, %c0_i32_24 : i32
        scf.if %38 {
          %cst_37 = arith.constant 0.000000e+00 : f32
          %53 = vector.broadcast %cst_37 : f32 to vector<32x1xf32>
          %c0_38 = arith.constant 0 : index
          %c0_39 = arith.constant 0 : index
          %54 = vector.load %arg10[%c0_38, %c0_39] : memref<32x1xf32, #tpu.memory_space<vmem>>, vector<32x1xf32>
          tpu.vector_store %arg10[%c0_38, %c0_39], %53 {strides = array<i32>} : memref<32x1xf32, #tpu.memory_space<vmem>>, vector<32x1xf32>,
          %cst_40 = arith.constant 0.000000e+00 : f32
          %55 = vector.broadcast %cst_40 : f32 to vector<32x1xf32>
          %c0_41 = arith.constant 0 : index
          %c0_42 = arith.constant 0 : index
          %56 = vector.load %arg11[%c0_41, %c0_42] : memref<32x1xf32, #tpu.memory_space<vmem>>, vector<32x1xf32>
          tpu.vector_store %arg11[%c0_41, %c0_42], %55 {strides = array<i32>} : memref<32x1xf32, #tpu.memory_space<vmem>>, vector<32x1xf32>,
        } else {
        }
        %c0_25 = arith.constant 0 : index
        %c0_26 = arith.constant 0 : index
        %39 = vector.load %arg10[%c0_25, %c0_26] : memref<32x1xf32, #tpu.memory_space<vmem>>, vector<32x1xf32>
        %cst_27 = arith.constant dense<0.000000e+00> : vector<32xf32>
        %40 = vector.multi_reduction <add>, %29, %cst_27 [1] : vector<32x8xf32> to vector<32xf32>
        %41 = vector.shape_cast %40 : vector<32xf32> to vector<32x1xf32>
        %42 = arith.addf %39, %41 : vector<32x1xf32>
        %c0_28 = arith.constant 0 : index
        %c0_29 = arith.constant 0 : index
        %43 = vector.load %arg10[%c0_28, %c0_29] : memref<32x1xf32, #tpu.memory_space<vmem>>, vector<32x1xf32>
        tpu.vector_store %arg10[%c0_28, %c0_29], %42 {strides = array<i32>} : memref<32x1xf32, #tpu.memory_space<vmem>>, vector<32x1xf32>,
        %c0_30 = arith.constant 0 : index
        %c0_31 = arith.constant 0 : index
        %44 = vector.load %arg11[%c0_30, %c0_31] : memref<32x1xf32, #tpu.memory_space<vmem>>, vector<32x1xf32>
        %45 = arith.mulf %29, %29 : vector<32x8xf32>
        %cst_32 = arith.constant dense<0.000000e+00> : vector<32xf32>
        %46 = vector.multi_reduction <add>, %45, %cst_32 [1] : vector<32x8xf32> to vector<32xf32>
        %47 = vector.shape_cast %46 : vector<32xf32> to vector<32x1xf32>
        %48 = arith.addf %44, %47 : vector<32x1xf32>
        %c0_33 = arith.constant 0 : index
        %c0_34 = arith.constant 0 : index
        %49 = vector.load %arg11[%c0_33, %c0_34] : memref<32x1xf32, #tpu.memory_space<vmem>>, vector<32x1xf32>
        tpu.vector_store %arg11[%c0_33, %c0_34], %48 {strides = array<i32>} : memref<32x1xf32, #tpu.memory_space<vmem>>, vector<32x1xf32>,
        %c0_i32_35 = arith.constant 0 : i32
        %50 = arith.cmpi eq, %arg1, %c0_i32_35 : i32
        %51 = arith.extui %50 : i1 to i32
        %c0_i32_36 = arith.constant 0 : i32
        %52 = arith.cmpi ne, %51, %c0_i32_36 : i32
        scf.if %52 {
          %c0_37 = arith.constant 0 : index
          %c0_38 = arith.constant 0 : index
          %53 = vector.load %arg10[%c0_37, %c0_38] : memref<32x1xf32, #tpu.memory_space<vmem>>, vector<32x1xf32>
          %cst_39 = arith.constant 1.250000e-01 : f32
          %54 = vector.broadcast %cst_39 : f32 to vector<32x1xf32>
          %55 = arith.mulf %53, %54 : vector<32x1xf32>
          %c0_40 = arith.constant 0 : index
          %c0_41 = arith.constant 0 : index
          %56 = vector.load %arg11[%c0_40, %c0_41] : memref<32x1xf32, #tpu.memory_space<vmem>>, vector<32x1xf32>
          %cst_42 = arith.constant 1.250000e-01 : f32
          %57 = vector.broadcast %cst_42 : f32 to vector<32x1xf32>
          %58 = arith.mulf %56, %57 : vector<32x1xf32>
          %59 = arith.mulf %55, %55 : vector<32x1xf32>
          %60 = arith.subf %58, %59 : vector<32x1xf32>
          %cst_43 = arith.constant 9.99999974E-6 : f32
          %61 = vector.broadcast %cst_43 : f32 to vector<32x1xf32>
          %62 = arith.addf %60, %61 : vector<32x1xf32>
          %63 = math.rsqrt %62 : vector<32x1xf32>
          %64 = arith.mulf %4, %63 : vector<32x1xf32>
          %c0_44 = arith.constant 0 : index
          %c0_45 = arith.constant 0 : index
          %65 = vector.load %arg14[%c0_44, %c0_45] : memref<32x1xf32, #tpu.memory_space<vmem>>, vector<32x1xf32>
          tpu.vector_store %arg14[%c0_44, %c0_45], %64 {strides = array<i32>} : memref<32x1xf32, #tpu.memory_space<vmem>>, vector<32x1xf32>,
          %66 = arith.mulf %55, %64 : vector<32x1xf32>
          %67 = arith.subf %5, %66 : vector<32x1xf32>
          %c0_46 = arith.constant 0 : index
          %c0_47 = arith.constant 0 : index
          %68 = vector.load %arg15[%c0_46, %c0_47] : memref<32x1xf32, #tpu.memory_space<vmem>>, vector<32x1xf32>
          tpu.vector_store %arg15[%c0_46, %c0_47], %67 {strides = array<i32>} : memref<32x1xf32, #tpu.memory_space<vmem>>, vector<32x1xf32>,
        } else {
        }
      } else {
      }
      %c2_i32 = arith.constant 2 : i32
      %33 = arith.cmpi eq, %arg0, %c2_i32 : i32
      %34 = arith.extui %33 : i1 to i32
      %c0_i32_22 = arith.constant 0 : i32
      %35 = arith.cmpi ne, %34, %c0_i32_22 : i32
      scf.if %35 {
        %c0_23 = arith.constant 0 : index
        %c0_24 = arith.constant 0 : index
        %36 = vector.load %arg14[%c0_23, %c0_24] : memref<32x1xf32, #tpu.memory_space<vmem>>, vector<32x1xf32>
        %37 = vector.broadcast %36 : vector<32x1xf32> to vector<32x8xf32>
        %38 = arith.mulf %29, %37 : vector<32x8xf32>
        %c0_25 = arith.constant 0 : index
        %c0_26 = arith.constant 0 : index
        %39 = vector.load %arg15[%c0_25, %c0_26] : memref<32x1xf32, #tpu.memory_space<vmem>>, vector<32x1xf32>
        %40 = vector.broadcast %39 : vector<32x1xf32> to vector<32x8xf32>
        %41 = arith.addf %38, %40 : vector<32x8xf32>
        %c0_27 = arith.constant 0 : index
        %c0_28 = arith.constant 0 : index
        %42 = vector.load %arg5[%c0_27, %c0_28] : memref<1x32xf32, #tpu.memory_space<vmem>>, vector<1x32xf32>
        %cst_29 = arith.constant dense<0.000000e+00> : vector<1x8xf32>
        %43 = tpu.matmul %42, %41, %cst_29 {dimension_numbers = #tpu.dot_dimension_numbers<[1], [0], [0], [1], [0, 0, 1, 1], [], []>} : vector<1x32xf32>, vector<32x8xf32>, vector<1x8xf32> -> vector<1x8xf32>
        %44 = vector.broadcast %6 : vector<1x1xf32> to vector<1x8xf32>
        %45 = arith.addf %43, %44 : vector<1x8xf32>
        %cst_30 = arith.constant 5.000000e-01 : f32
        %46 = vector.broadcast %cst_30 : f32 to vector<1x8xf32>
        %47 = arith.mulf %46, %45 : vector<1x8xf32>
        %48 = math.tanh %47 : vector<1x8xf32>
        %cst_31 = arith.constant 1.000000e+00 : f32
        %49 = vector.broadcast %cst_31 : f32 to vector<1x8xf32>
        %50 = arith.addf %49, %48 : vector<1x8xf32>
        %cst_32 = arith.constant 5.000000e-01 : f32
        %51 = vector.broadcast %cst_32 : f32 to vector<1x8xf32>
        %52 = arith.mulf %51, %50 : vector<1x8xf32>
        %c0_33 = arith.constant 0 : index
        %c0_34 = arith.constant 0 : index
        %53 = vector.load %arg7[%c0_33, %c0_34] : memref<1x8xf32, #tpu.memory_space<vmem>>, vector<1x8xf32>
        tpu.vector_store %arg7[%c0_33, %c0_34], %52 {strides = array<i32>} : memref<1x8xf32, #tpu.memory_space<vmem>>, vector<1x8xf32>,
      } else {
      }
    } else {
    }
    return
  }
  func.func @transform_0(%arg0: i32, %arg1: i32) -> (i32, i32) {
    %c0_i32 = arith.constant 0 : i32
    %c0_i32_0 = arith.constant 0 : i32
    return %c0_i32, %arg1 : i32, i32
  }
  func.func @transform_1(%arg0: i32, %arg1: i32) -> (i32, i32) {
    %c0_i32 = arith.constant 0 : i32
    %c0_i32_0 = arith.constant 0 : i32
    %c0_i32_1 = arith.constant 0 : i32
    return %c0_i32, %c0_i32_0 : i32, i32
  }
  func.func @transform_2(%arg0: i32, %arg1: i32) -> (i32, i32) {
    %c0_i32 = arith.constant 0 : i32
    %c0_i32_0 = arith.constant 0 : i32
    %c0_i32_1 = arith.constant 0 : i32
    return %c0_i32, %c0_i32_0 : i32, i32
  }
  func.func @transform_3(%arg0: i32, %arg1: i32) -> (i32, i32) {
    %c0_i32 = arith.constant 0 : i32
    %c0_i32_0 = arith.constant 0 : i32
    %c0_i32_1 = arith.constant 0 : i32
    return %c0_i32, %c0_i32_0 : i32, i32
  }
  func.func @transform_4(%arg0: i32, %arg1: i32) -> (i32, i32) {
    %c0_i32 = arith.constant 0 : i32
    %c0_i32_0 = arith.constant 0 : i32
    %c0_i32_1 = arith.constant 0 : i32
    return %c0_i32, %c0_i32_0 : i32, i32
  }
  func.func @transform_5(%arg0: i32, %arg1: i32) -> (i32, i32) {
    %c0_i32 = arith.constant 0 : i32
    %c0_i32_0 = arith.constant 0 : i32
    return %c0_i32, %arg1 : i32, i32
  }
}

</mosaic_0001>

<llo_original>
// kernel: tpu_custom_call.1
$region0: #{tpu_custom_call.1}
  #allocation0 [shape = 'u32[]', space=smem, size = 0x4, offset = 0x4, fixed_abs, tag = 'smem constant byte address 0x4 - core index']
  #allocation1 [shape = 'u32[144,128]{1,0:T(1,128)}', space=vmem, size = 0x12000, scoped, tag = 'internal scratch']
  #allocation2 [shape = 'f32[32,1]{1,0:T(8,128)}', space=vmem, size = 0x4000, scoped, tag = 'scratch operand']
  #allocation3 [shape = 'f32[32,1]{1,0:T(8,128)}', space=vmem, size = 0x4000, scoped, tag = 'scratch operand']
  #allocation4 [shape = 'f32[32,1]{1,0:T(8,128)}', space=vmem, size = 0x4000, scoped, tag = 'scratch operand']
  #allocation5 [shape = 'f32[32,1]{1,0:T(8,128)}', space=vmem, size = 0x4000, scoped, tag = 'scratch operand']
  #allocation6 [shape = 'f32[32,1]{1,0:T(8,128)}', space=vmem, size = 0x4000, scoped, tag = 'scratch operand']
  #allocation7 [shape = 'f32[32,1]{1,0:T(8,128)}', space=vmem, size = 0x4000, scoped, tag = 'scratch operand']
  #allocation8 [shape = 'f32[32,1]{1,0:T(8,128)}', space=vmem, size = 0x4000, scoped, tag = 'scratch operand']
  #allocation9 [shape = 'f32[32,1]{1,0:T(8,128)}', space=vmem, size = 0x4000, scoped, tag = 'scratch operand']
  %s0 = inlined_call_operand.vmem [shape: f32[16,8], index: 0, kind: input, shape index: {}]
  %s1 = inlined_call_operand.vmem [shape: f32[32,16], index: 1, kind: input, shape index: {}]
  %s2 = inlined_call_operand.vmem [shape: f32[32,32], index: 2, kind: input, shape index: {}]
  %s3 = inlined_call_operand.vmem [shape: f32[1,32], index: 3, kind: input, shape index: {}]
  %s4 = inlined_call_operand.vmem [shape: f32[32,8], index: 4, kind: input, shape index: {}]
  %s5 = inlined_call_operand.hbm [shape: f32[1,8], index: 5, kind: output, shape index: {}]
  %s6 = sld [smem:[#allocation0]]
  $region85: #{tpu_custom_call.1} parent=0
    _
  %s8 = ssub.s32 1, %s6
  %s9 = scalar_select 0, %s8, %s6
  $region1: #{tpu_custom_call.1} parent=0
    #allocation10 [shape = 'u8[512]{0}', space=vmem, size = 0x400, scoped, tag = 'output window, operand 0, single buffered']
    #allocation11 [shape = 's32[2]{0}', space=sflag, size = 0x8, scoped, tag = 'scoped memory for tpu_custom_call.1']
    %10 = vsyncpa [#allocation11], 0
    loop: start=0, step=1, limit=5
    $region2: #{tpu_custom_call.1} parent=1 // loop_pre_header
      _
    $region3: #{tpu_custom_call.1} parent=1 // loop_header
      %s12 = sphi 0, %s16
      %p13 = scmp.ge.s32.totalorder %s12, 5
      %s19 = sphi 0, %s31
      %s20 = sphi 0, %s27
      %s21 = sphi 0, %s19
      %s22 = sphi 0, %s20
      %s23 = sphi 0, %s21
      %s24 = sphi 0, %s22
      %s34 = sphi 0, %s36
      %s37 = sphi 0, %s34
      %s38 = sphi 0, %s37
      %s54 = sphi 0, %s38
      %s58 = sphi 0, %s58
      %s60 = sphi 0, %s58
      %s61 = sphi 0, %s60
      %s75 = sphi 0, %s61
      %s79 = sphi 0, %s79
      %s81 = sphi 0, %s79
      %s82 = sphi 0, %s81
      %s96 = sphi 0, %s82
      %s100 = sphi 0, %s100
      %s102 = sphi 0, %s100
      %s103 = sphi 0, %s102
      %s117 = sphi 0, %s103
      %s121 = sphi 0, %s121
      %s123 = sphi 0, %s121
      %s124 = sphi 0, %s123
      %s138 = sphi 0, %s124
      %s144 = sphi 0, %s146
      %s147 = sphi 0, %s144
      %s148 = sphi 0, %s147
      %s164 = sphi 0, %s148
    $region4: #{tpu_custom_call.1} parent=1 // loop_header_branch
      %15 = sbr.rel (%p13) target = $region8
    $region5: #{tpu_custom_call.1} parent=1 // loop_body
      %s17 = ssub.s32 %s12, 1
      %s18 = ssub.s32 %s12, 2
      %s25 = sadd.s32 1, %s20
      %p26 = scmp.ge.s32.totalorder %s25, 1
      %s27 = scalar_select %p26, 0, %s25
      %s28 = sadd.s32 1, %s19
      %s29 = scalar_select %p26, %s28, %s19
      %p30 = scmp.ge.s32.totalorder %s29, 3
      %s31 = scalar_select %p30, 0, %s29
      %s32 = ssub.s32 %s20, %s27
      %p33 = scmp.eq.s32.totalorder %s32, 0
      %s35 = sadd.s32 %s34, 1
      %s36 = scalar_select %p33, %s34, %s35
      %p39 = pneg %p33
      %p40 = scmp.eq.s32.totalorder %s12, 2
      %p41 = por %p39, %p40
      %p42 = scmp.ne.s32.totalorder %s34, %s37
      %p43 = scmp.eq.s32.totalorder %s12, 0
      %p44 = por %p42, %p43
      %p45 = scmp.ne.s32.totalorder %s34, %s37
      %p46 = scmp.eq.s32.totalorder %s17, 2
      %p47 = por %p45, %p46
      %p48 = scmp.ne.s32.totalorder %s37, %s38
      %p49 = scmp.eq.s32.totalorder %s17, 0
      %p50 = por %p48, %p49
      %p51 = scmp.ne.s32.totalorder %s37, %s38
      %p52 = scmp.eq.s32.totalorder %s18, 2
      %p53 = por %p51, %p52
      %p55 = scmp.ne.s32.totalorder %s38, %s54
      %p56 = scmp.eq.s32.totalorder %s18, 0
      %p57 = por %p55, %p56
      %s59 = sadd.s32 %s58, 1
      %p62 = scmp.eq.s32.totalorder %s12, 2
      %p63 = scmp.ne.s32.totalorder %s58, %s60
      %p64 = scmp.eq.s32.totalorder %s12, 0
      %p65 = por %p63, %p64
      %p66 = scmp.ne.s32.totalorder %s58, %s60
      %p67 = scmp.eq.s32.totalorder %s17, 2
      %p68 = por %p66, %p67
      %p69 = scmp.ne.s32.totalorder %s60, %s61
      %p70 = scmp.eq.s32.totalorder %s17, 0
      %p71 = por %p69, %p70
      %p72 = scmp.ne.s32.totalorder %s60, %s61
      %p73 = scmp.eq.s32.totalorder %s18, 2
      %p74 = por %p72, %p73
      %p76 = scmp.ne.s32.totalorder %s61, %s75
      %p77 = scmp.eq.s32.totalorder %s18, 0
      %p78 = por %p76, %p77
      %s80 = sadd.s32 %s79, 1
      %p83 = scmp.eq.s32.totalorder %s12, 2
      %p84 = scmp.ne.s32.totalorder %s79, %s81
      %p85 = scmp.eq.s32.totalorder %s12, 0
      %p86 = por %p84, %p85
      %p87 = scmp.ne.s32.totalorder %s79, %s81
      %p88 = scmp.eq.s32.totalorder %s17, 2
      %p89 = por %p87, %p88
      %p90 = scmp.ne.s32.totalorder %s81, %s82
      %p91 = scmp.eq.s32.totalorder %s17, 0
      %p92 = por %p90, %p91
      %p93 = scmp.ne.s32.totalorder %s81, %s82
      %p94 = scmp.eq.s32.totalorder %s18, 2
      %p95 = por %p93, %p94
      %p97 = scmp.ne.s32.totalorder %s82, %s96
      %p98 = scmp.eq.s32.totalorder %s18, 0
      %p99 = por %p97, %p98
      %s101 = sadd.s32 %s100, 1
      %p104 = scmp.eq.s32.totalorder %s12, 2
      %p105 = scmp.ne.s32.totalorder %s100, %s102
      %p106 = scmp.eq.s32.totalorder %s12, 0
      %p107 = por %p105, %p106
      %p108 = scmp.ne.s32.totalorder %s100, %s102
      %p109 = scmp.eq.s32.totalorder %s17, 2
      %p110 = por %p108, %p109
      %p111 = scmp.ne.s32.totalorder %s102, %s103
      %p112 = scmp.eq.s32.totalorder %s17, 0
      %p113 = por %p111, %p112
      %p114 = scmp.ne.s32.totalorder %s102, %s103
      %p115 = scmp.eq.s32.totalorder %s18, 2
      %p116 = por %p114, %p115
      %p118 = scmp.ne.s32.totalorder %s103, %s117
      %p119 = scmp.eq.s32.totalorder %s18, 0
      %p120 = por %p118, %p119
      %s122 = sadd.s32 %s121, 1
      %p125 = scmp.eq.s32.totalorder %s12, 2
      %p126 = scmp.ne.s32.totalorder %s121, %s123
      %p127 = scmp.eq.s32.totalorder %s12, 0
      %p128 = por %p126, %p127
      %p129 = scmp.ne.s32.totalorder %s121, %s123
      %p130 = scmp.eq.s32.totalorder %s17, 2
      %p131 = por %p129, %p130
      %p132 = scmp.ne.s32.totalorder %s123, %s124
      %p133 = scmp.eq.s32.totalorder %s17, 0
      %p134 = por %p132, %p133
      %p135 = scmp.ne.s32.totalorder %s123, %s124
      %p136 = scmp.eq.s32.totalorder %s18, 2
      %p137 = por %p135, %p136
      %p139 = scmp.ne.s32.totalorder %s124, %s138
      %p140 = scmp.eq.s32.totalorder %s18, 0
      %p141 = por %p139, %p140
      %s142 = ssub.s32 %s20, %s27
      %p143 = scmp.eq.s32.totalorder %s142, 0
      %s145 = sadd.s32 %s144, 1
      %s146 = scalar_select %p143, %s144, %s145
      %p149 = pneg %p143
      %p150 = scmp.eq.s32.totalorder %s12, 2
      %p151 = por %p149, %p150
      %p152 = scmp.ne.s32.totalorder %s144, %s147
      %p153 = scmp.eq.s32.totalorder %s12, 0
      %p154 = por %p152, %p153
      %p155 = scmp.ne.s32.totalorder %s144, %s147
      %p156 = scmp.eq.s32.totalorder %s17, 2
      %p157 = por %p155, %p156
      %p158 = scmp.ne.s32.totalorder %s147, %s148
      %p159 = scmp.eq.s32.totalorder %s17, 0
      %p160 = por %p158, %p159
      %p161 = scmp.ne.s32.totalorder %s147, %s148
      %p162 = scmp.eq.s32.totalorder %s18, 2
      %p163 = por %p161, %p162
      %p165 = scmp.ne.s32.totalorder %s148, %s164
      %p166 = scmp.eq.s32.totalorder %s18, 0
      %p167 = por %p165, %p166
      %p168 = scmp.le.s32.totalorder 1, %s12
      %p169 = scmp.lt.s32.totalorder %s12, 4
      %p170 = pnand %p168, %p169
      %p171 = pneg %p170
      // Predicated region
      $region9: #{tpu_custom_call.1} parent=5 // pred_check
        _
      $region10: #{tpu_custom_call.1} parent=5 // pred_check_branch
        %173 = sbr.rel (%p170) target = $region12
      $region11: #{tpu_custom_call.1} parent=5 // pred_region
        %s174 = ssub.s32 %s12, 1
        // Predicated region
        $region13: #{tpu_custom_call.1} parent=11 // pred_check
          %p175 = pneg %p50
        $region14: #{tpu_custom_call.1} parent=11 // pred_check_branch
          %177 = sbr.rel (%p175) target = $region16
        $region15: #{tpu_custom_call.1} parent=11 // pred_region
          %p178 = scmp.lt.s32.totalorder %s22, 0
          %s179 = scalar_select %p178, %s22, 0
          %s180 = smul.addr %s179, 8
          %s181 = scalar_lea.vmem %s0, %s180
        $region16: #{tpu_custom_call.1} parent=11 // pred_fallthru
          _
        // Predicated region
        $region17: #{tpu_custom_call.1} parent=11 // pred_check
          %p182 = pneg %p71
        $region18: #{tpu_custom_call.1} parent=11 // pred_check_branch
          %184 = sbr.rel (%p182) target = $region20
        $region19: #{tpu_custom_call.1} parent=11 // pred_region
          _
        $region20: #{tpu_custom_call.1} parent=11 // pred_fallthru
          _
        // Predicated region
        $region21: #{tpu_custom_call.1} parent=11 // pred_check
          %p185 = pneg %p92
        $region22: #{tpu_custom_call.1} parent=11 // pred_check_branch
          %187 = sbr.rel (%p185) target = $region24
        $region23: #{tpu_custom_call.1} parent=11 // pred_region
          _
        $region24: #{tpu_custom_call.1} parent=11 // pred_fallthru
          _
        // Predicated region
        $region25: #{tpu_custom_call.1} parent=11 // pred_check
          %p188 = pneg %p113
        $region26: #{tpu_custom_call.1} parent=11 // pred_check_branch
          %190 = sbr.rel (%p188) target = $region28
        $region27: #{tpu_custom_call.1} parent=11 // pred_region
          _
        $region28: #{tpu_custom_call.1} parent=11 // pred_fallthru
          _
        // Predicated region
        $region29: #{tpu_custom_call.1} parent=11 // pred_check
          %p191 = pneg %p134
        $region30: #{tpu_custom_call.1} parent=11 // pred_check_branch
          %193 = sbr.rel (%p191) target = $region32
        $region31: #{tpu_custom_call.1} parent=11 // pred_region
          _
        $region32: #{tpu_custom_call.1} parent=11 // pred_fallthru
          _
      $region12: #{tpu_custom_call.1} parent=5 // pred_fallthru
        _
      %p194 = scmp.lt.s32.totalorder %s12, 3
      // Predicated region
      $region33: #{tpu_custom_call.1} parent=5 // pred_check
        %p195 = pneg %p194
      $region34: #{tpu_custom_call.1} parent=5 // pred_check_branch
        %197 = sbr.rel (%p195) target = $region36
      $region35: #{tpu_custom_call.1} parent=5 // pred_region
        _
      $region36: #{tpu_custom_call.1} parent=5 // pred_fallthru
        _
      %p198 = scmp.le.s32.totalorder 1, %s12
      %p199 = scmp.lt.s32.totalorder %s12, 4
      %p200 = pnand %p198, %p199
      %p201 = pneg %p200
      // Predicated region
      $region37: #{tpu_custom_call.1} parent=5 // pred_check
        _
      $region38: #{tpu_custom_call.1} parent=5 // pred_check_branch
        %203 = sbr.rel (%p200) target = $region40
      $region39: #{tpu_custom_call.1} parent=5 // pred_region
        %s204 = ssub.s32 %s12, 1
        %p205 = scmp.lt.s32.totalorder %s22, 0
        %s206 = scalar_select %p205, %s22, 0
        %s207 = smul.addr %s206, 8
        %s208 = scalar_lea.vmem %s0, %s207
        %p209 = pneg %p50
        %p210 = pneg %p47
        %p211 = pneg %p71
        %p212 = pneg %p68
        %p213 = pneg %p92
        %p214 = pneg %p89
        %p215 = pneg %p113
        %p216 = pneg %p110
        %p217 = pneg %p134
        %p218 = pneg %p131
        %p219 = pneg %p160
        %p220 = pneg %p157
        %p221 = scmp.lt.s32.totalorder %s22, 0
        %s222 = scalar_select %p221, %s22, 0
        %s223 = smul.addr %s222, 8
        %s224 = scalar_lea.vmem %s0, %s223
        %v225 = vld [vmem:[%s4] sm:$0xff]
        %v226 = vld [vmem:[%s4 + $0x8] sm:$0xff]
        %v227 = vld [vmem:[%s4 + $0x10] sm:$0xff]
        %v228 = vld [vmem:[%s4 + $0x18] sm:$0xff]
        %v229 = vld [vmem:[%s4] sm:$0x1]
        %v230 = vld [vmem:[%s224] sm:$0xff]
        %v231 = vld [vmem:[%s224 + $0x8] sm:$0xff]
        %v232 = vld [vmem:[%s1] sm:$0xff]
        %v233 = vld [vmem:[%s1 + $0x8] sm:$0xff]
        %v234 = vld [vmem:[%s1 + $0x10] sm:$0xff]
        %v235 = vld [vmem:[%s1 + $0x18] sm:$0xff]
        %237 = vset.pattern.permute.xlu0 0
        %238 = vperm.xlu0 %237, %v225
        %v239 = vpop.permute.xlu0 %238
        %242 = vset.pattern.permute.xlu0 0
        %243 = vperm.xlu0 %242, %v226
        %v244 = vpop.permute.xlu0 %243
        %247 = vset.pattern.permute.xlu0 0
        %248 = vperm.xlu0 %247, %v227
        %v249 = vpop.permute.xlu0 %248
        %252 = vset.pattern.permute.xlu0 0
        %253 = vperm.xlu0 %252, %v228
        %v254 = vpop.permute.xlu0 %253
        %vm256 = vcmask 130048
        %v258 = vsel %vm256, %v232, 0
        %v261 = vsel %vm256, %v233, 0
        %v264 = vsel %vm256, %v234, 0
        %v267 = vsel %vm256, %v235, 0
        %269 = vmatprep.subr.mxu0 0.0
        %270 = vmatpush1.msra.mxu0 0.0
        %271 = vmatprep.subr.mxu0 0.0
        %272 = vmatpush1.msra.mxu0 0.0
        %273 = vmatprep.subr.mxu0 0.0
        %274 = vmatpush1.msra.mxu0 0.0
        %275 = vmatprep.subr.mxu0 0.0
        %276 = vmatpush1.msra.mxu0 0.0
        %277 = vmatprep.subr.mxu0 0.0
        %278 = vmatpush1.msra.mxu0 0.0
        %279 = vmatprep.subr.mxu0 0.0
        %280 = vmatpush1.msra.mxu0 0.0
        %281 = vmatprep.subr.mxu0 0.0
        %282 = vmatpush1.msra.mxu0 0.0
        %283 = vmatprep.subr.mxu0 0.0
        %284 = vmatpush1.msra.mxu0 0.0
        %285 = vmatprep.subr.mxu0 0.0
        %286 = vmatpush1.msra.mxu0 0.0
        %287 = vmatprep.subr.mxu0 0.0
        %288 = vmatpush1.msra.mxu0 0.0
        %289 = vmatprep.subr.mxu0 0.0
        %290 = vmatpush1.msra.mxu0 0.0
        %291 = vmatprep.subr.mxu0 0.0
        %292 = vmatpush1.msra.mxu0 0.0
        %293 = vmatprep.subr.mxu0 0.0
        %294 = vmatpush1.msra.mxu0 0.0
        %295 = vmatprep.subr.mxu0 0.0
        %296 = vmatpush1.msra.mxu0 0.0
        %297 = vmatprep.subr.mxu0 0.0
        %298 = vmatpush1.msra.mxu0 %v231
        %299 = vmatprep.subr.mxu0 0.0
        %300 = vmatpush1.msra.mxu0 %v230
        %301 = vmatprep.subr.mxu0 0.0
        %302 = vmatpush2.msra.mxu0 0.0
        %303 = vmatprep.subr.mxu0 0.0
        %304 = vmatpush2.msra.mxu0 0.0
        %305 = vmatprep.subr.mxu0 0.0
        %306 = vmatpush2.msra.mxu0 0.0
        %307 = vmatprep.subr.mxu0 0.0
        %308 = vmatpush2.msra.mxu0 0.0
        %309 = vmatprep.subr.mxu0 0.0
        %310 = vmatpush2.msra.mxu0 0.0
        %311 = vmatprep.subr.mxu0 0.0
        %312 = vmatpush2.msra.mxu0 0.0
        %313 = vmatprep.subr.mxu0 0.0
        %314 = vmatpush2.msra.mxu0 0.0
        %315 = vmatprep.subr.mxu0 0.0
        %316 = vmatpush2.msra.mxu0 0.0
        %317 = vmatprep.subr.mxu0 0.0
        %318 = vmatpush2.msra.mxu0 0.0
        %319 = vmatprep.subr.mxu0 0.0
        %320 = vmatpush2.msra.mxu0 0.0
        %321 = vmatprep.subr.mxu0 0.0
        %322 = vmatpush2.msra.mxu0 0.0
        %323 = vmatprep.subr.mxu0 0.0
        %324 = vmatpush2.msra.mxu0 0.0
        %325 = vmatprep.subr.mxu0 0.0
        %326 = vmatpush2.msra.mxu0 0.0
        %327 = vmatprep.subr.mxu0 0.0
        %328 = vmatpush2.msra.mxu0 0.0
        %329 = vmatprep.subr.mxu0 0.0
        %330 = vmatpush2.msra.mxu0 0.0
        %331 = vmatprep.subr.mxu0 0.0
        %332 = vmatpush2.msra.mxu0 0.0
        %333 = vmatprep.mubr.f32.mxu0 0.0
        %334 = vmatmul.mubr.f32.gmra.mxu0 %v258
        %v335 = vpop.f32.mrf.mxu0
        %v336 = vadd.f32 %v239, %v335
        %v337 = vpop.f32.mrf.mxu0
        %338 = vmatprep.mubr.f32.mxu0 0.0
        %339 = vmatmul.mubr.f32.gmra.mxu0 %v261
        %v340 = vpop.f32.mrf.mxu0
        %v341 = vadd.f32 %v244, %v340
        %v342 = vpop.f32.mrf.mxu0
        %343 = vmatprep.mubr.f32.mxu0 0.0
        %344 = vmatmul.mubr.f32.gmra.mxu0 %v264
        %v345 = vpop.f32.mrf.mxu0
        %v346 = vadd.f32 %v249, %v345
        %v347 = vpop.f32.mrf.mxu0
        %348 = vmatprep.mubr.f32.mxu0 0.0
        %349 = vmatmul.mubr.f32.gmra.mxu0 %v267
        %v350 = vpop.f32.mrf.mxu0
        %v351 = vadd.f32 %v254, %v350
        %v352 = vpop.f32.mrf.mxu0
        %353 = vdwg.mxu0
        %v354 = vtanh.pop %v336
        %v355 = vtanh.pop %v341
        %v356 = vtanh.pop %v346
        %v357 = vtanh.pop %v351
        %p358 = scmp.eq.s32.totalorder %s21, 0
        // Predicated region
        $region41: #{tpu_custom_call.1} parent=39 // pred_check
          %p359 = pneg %p358
        $region42: #{tpu_custom_call.1} parent=39 // pred_check_branch
          %361 = sbr.rel (%p359) target = $region44
        $region43: #{tpu_custom_call.1} parent=39 // pred_region
          %p362 = scmp.eq.s32.totalorder %s22, 0
          // Predicated region
          $region45: #{tpu_custom_call.1} parent=43 // pred_check
            %p363 = pneg %p362
          $region46: #{tpu_custom_call.1} parent=43 // pred_check_branch
            %365 = sbr.rel (%p363) target = $region48
          $region47: #{tpu_custom_call.1} parent=43 // pred_region
            %vm366 = vcmask 7168
            %367 = vst.msk [vmem:[#allocation2] sm:$0xff] %vm366, 0.0
            %368 = vst.msk [vmem:[#allocation2 + $0x8] sm:$0xff] %vm366, 0.0
            %369 = vst.msk [vmem:[#allocation2 + $0x10] sm:$0xff] %vm366, 0.0
            %370 = vst.msk [vmem:[#allocation2 + $0x18] sm:$0xff] %vm366, 0.0
            %371 = vst.msk [vmem:[#allocation3] sm:$0xff] %vm366, 0.0
            %372 = vst.msk [vmem:[#allocation3 + $0x8] sm:$0xff] %vm366, 0.0
            %373 = vst.msk [vmem:[#allocation3 + $0x10] sm:$0xff] %vm366, 0.0
            %374 = vst.msk [vmem:[#allocation3 + $0x18] sm:$0xff] %vm366, 0.0
          $region48: #{tpu_custom_call.1} parent=43 // pred_fallthru
            _
          %v375 = vld [vmem:[#allocation2] sm:$0xff]
          %v376 = vld [vmem:[#allocation2 + $0x8] sm:$0xff]
          %v377 = vld [vmem:[#allocation2 + $0x10] sm:$0xff]
          %v378 = vld [vmem:[#allocation2 + $0x18] sm:$0xff]
          %vm379 = vcmask 64512
          %v380 = vsel %vm379, %v354, 0.0
          %381 = vadd.xlane.f32.xlu0 %v380
          %v382 = vpop.xlane.xlu0 %381
          %v383 = vsel %vm379, %v355, 0.0
          %384 = vadd.xlane.f32.xlu0 %v383
          %v385 = vpop.xlane.xlu0 %384
          %v386 = vsel %vm379, %v356, 0.0
          %387 = vadd.xlane.f32.xlu0 %v386
          %v388 = vpop.xlane.xlu0 %387
          %v389 = vsel %vm379, %v357, 0.0
          %390 = vadd.xlane.f32.xlu0 %v389
          %v391 = vpop.xlane.xlu0 %390
          %v392 = vadd.f32 %v375, %v382
          %v393 = vadd.f32 %v376, %v385
          %v394 = vadd.f32 %v377, %v388
          %v395 = vadd.f32 %v378, %v391
          %vm396 = vcmask 7168
          %397 = vst.msk [vmem:[#allocation2] sm:$0xff] %vm396, %v392
          %398 = vst.msk [vmem:[#allocation2 + $0x8] sm:$0xff] %vm396, %v393
          %399 = vst.msk [vmem:[#allocation2 + $0x10] sm:$0xff] %vm396, %v394
          %400 = vst.msk [vmem:[#allocation2 + $0x18] sm:$0xff] %vm396, %v395
          %v401 = vld [vmem:[#allocation3] sm:$0xff]
          %v402 = vld [vmem:[#allocation3 + $0x8] sm:$0xff]
          %v403 = vld [vmem:[#allocation3 + $0x10] sm:$0xff]
          %v404 = vld [vmem:[#allocation3 + $0x18] sm:$0xff]
          %v405 = vmul.f32 %v354, %v354
          %v406 = vmul.f32 %v355, %v355
          %v407 = vmul.f32 %v356, %v356
          %v408 = vmul.f32 %v357, %v357
          %v409 = vsel %vm379, %v405, 0.0
          %410 = vadd.xlane.f32.xlu0 %v409
          %v411 = vpop.xlane.xlu0 %410
          %v412 = vsel %vm379, %v406, 0.0
          %413 = vadd.xlane.f32.xlu0 %v412
          %v414 = vpop.xlane.xlu0 %413
          %v415 = vsel %vm379, %v407, 0.0
          %416 = vadd.xlane.f32.xlu0 %v415
          %v417 = vpop.xlane.xlu0 %416
          %v418 = vsel %vm379, %v408, 0.0
          %419 = vadd.xlane.f32.xlu0 %v418
          %v420 = vpop.xlane.xlu0 %419
          %v421 = vadd.f32 %v401, %v411
          %v422 = vadd.f32 %v402, %v414
          %v423 = vadd.f32 %v403, %v417
          %v424 = vadd.f32 %v404, %v420
          %425 = vst.msk [vmem:[#allocation3] sm:$0xff] %vm396, %v421
          %426 = vst.msk [vmem:[#allocation3 + $0x8] sm:$0xff] %vm396, %v422
          %427 = vst.msk [vmem:[#allocation3 + $0x10] sm:$0xff] %vm396, %v423
          %428 = vst.msk [vmem:[#allocation3 + $0x18] sm:$0xff] %vm396, %v424
          // Predicated region
          $region49: #{tpu_custom_call.1} parent=43 // pred_check
            %p429 = pneg %p362
          $region50: #{tpu_custom_call.1} parent=43 // pred_check_branch
            %431 = sbr.rel (%p429) target = $region52
          $region51: #{tpu_custom_call.1} parent=43 // pred_region
            %v432 = vld [vmem:[#allocation2] sm:$0xff]
            %v433 = vld [vmem:[#allocation2 + $0x8] sm:$0xff]
            %v434 = vld [vmem:[#allocation2 + $0x10] sm:$0xff]
            %v435 = vld [vmem:[#allocation2 + $0x18] sm:$0xff]
            %v436 = vmul.f32 %v432, 0.125
            %v437 = vmul.f32 %v433, 0.125
            %v438 = vmul.f32 %v434, 0.125
            %v439 = vmul.f32 %v435, 0.125
            %v440 = vld [vmem:[#allocation3] sm:$0xff]
            %v441 = vld [vmem:[#allocation3 + $0x8] sm:$0xff]
            %v442 = vld [vmem:[#allocation3 + $0x10] sm:$0xff]
            %v443 = vld [vmem:[#allocation3 + $0x18] sm:$0xff]
            %v444 = vmul.f32 %v440, 0.125
            %v445 = vmul.f32 %v441, 0.125
            %v446 = vmul.f32 %v442, 0.125
            %v447 = vmul.f32 %v443, 0.125
            %v448 = vmul.f32 %v436, %v436
            %v449 = vmul.f32 %v437, %v437
            %v450 = vmul.f32 %v438, %v438
            %v451 = vmul.f32 %v439, %v439
            %v452 = vsub.f32 %v444, %v448
            %v453 = vsub.f32 %v445, %v449
            %v454 = vsub.f32 %v446, %v450
            %v455 = vsub.f32 %v447, %v451
            %v456 = vadd.f32 %v452, 1e-05
            %v457 = vadd.f32 %v453, 1e-05
            %v458 = vadd.f32 %v454, 1e-05
            %v459 = vadd.f32 %v455, 1e-05
            %v460 = vrsqrt.pop %v456
            %v461 = vrsqrt.pop %v457
            %v462 = vrsqrt.pop %v458
            %v463 = vrsqrt.pop %v459
            %468 = vrot.lane.b32.xlu0 %v460, 1
            %v469 = vpop.permute.xlu0 %468
            %470 = vrot.lane.b32.xlu0 %v461, 1
            %v471 = vpop.permute.xlu0 %470
            %472 = vrot.lane.b32.xlu0 %v462, 1
            %v473 = vpop.permute.xlu0 %472
            %474 = vrot.lane.b32.xlu0 %v463, 1
            %v475 = vpop.permute.xlu0 %474
            %v480 = vmul.f32 %v225, %v469
            %v481 = vmul.f32 %v226, %v471
            %v482 = vmul.f32 %v227, %v473
            %v483 = vmul.f32 %v228, %v475
            %488 = vrot.lane.b32.xlu0 %v480, 127
            %v489 = vpop.permute.xlu0 %488
            %490 = vrot.lane.b32.xlu0 %v481, 127
            %v491 = vpop.permute.xlu0 %490
            %492 = vrot.lane.b32.xlu0 %v482, 127
            %v493 = vpop.permute.xlu0 %492
            %494 = vrot.lane.b32.xlu0 %v483, 127
            %v495 = vpop.permute.xlu0 %494
            %500 = vst.msk [vmem:[#allocation6] sm:$0xff] %vm396, %v489
            %501 = vst.msk [vmem:[#allocation6 + $0x8] sm:$0xff] %vm396, %v491
            %502 = vst.msk [vmem:[#allocation6 + $0x10] sm:$0xff] %vm396, %v493
            %503 = vst.msk [vmem:[#allocation6 + $0x18] sm:$0xff] %vm396, %v495
            %v504 = vmul.f32 %v436, %v489
            %v505 = vmul.f32 %v437, %v491
            %v506 = vmul.f32 %v438, %v493
            %v507 = vmul.f32 %v439, %v495
            %512 = vrot.lane.b32.xlu0 %v504, 2
            %v513 = vpop.permute.xlu0 %512
            %514 = vrot.lane.b32.xlu0 %v505, 2
            %v515 = vpop.permute.xlu0 %514
            %516 = vrot.lane.b32.xlu0 %v506, 2
            %v517 = vpop.permute.xlu0 %516
            %518 = vrot.lane.b32.xlu0 %v507, 2
            %v519 = vpop.permute.xlu0 %518
            %v524 = vsub.f32 %v225, %v513
            %v525 = vsub.f32 %v226, %v515
            %v526 = vsub.f32 %v227, %v517
            %v527 = vsub.f32 %v228, %v519
            %532 = vrot.lane.b32.xlu0 %v524, 126
            %v533 = vpop.permute.xlu0 %532
            %534 = vrot.lane.b32.xlu0 %v525, 126
            %v535 = vpop.permute.xlu0 %534
            %536 = vrot.lane.b32.xlu0 %v526, 126
            %v537 = vpop.permute.xlu0 %536
            %538 = vrot.lane.b32.xlu0 %v527, 126
            %v539 = vpop.permute.xlu0 %538
            %544 = vst.msk [vmem:[#allocation7] sm:$0xff] %vm396, %v533
            %545 = vst.msk [vmem:[#allocation7 + $0x8] sm:$0xff] %vm396, %v535
            %546 = vst.msk [vmem:[#allocation7 + $0x10] sm:$0xff] %vm396, %v537
            %547 = vst.msk [vmem:[#allocation7 + $0x18] sm:$0xff] %vm396, %v539
          $region52: #{tpu_custom_call.1} parent=43 // pred_fallthru
            _
        $region44: #{tpu_custom_call.1} parent=39 // pred_fallthru
          _
        %p548 = scmp.ge.s32.totalorder %s21, 1
        // Predicated region
        $region53: #{tpu_custom_call.1} parent=39 // pred_check
          %p549 = pneg %p548
        $region54: #{tpu_custom_call.1} parent=39 // pred_check_branch
          %551 = sbr.rel (%p549) target = $region56
        $region55: #{tpu_custom_call.1} parent=39 // pred_region
          %v552 = vld [vmem:[#allocation6] sm:$0xff]
          %v553 = vld [vmem:[#allocation6 + $0x8] sm:$0xff]
          %v554 = vld [vmem:[#allocation6 + $0x10] sm:$0xff]
          %v555 = vld [vmem:[#allocation6 + $0x18] sm:$0xff]
          %557 = vset.pattern.permute.xlu0 0
          %558 = vperm.xlu0 %557, %v552
          %v559 = vpop.permute.xlu0 %558
          %562 = vset.pattern.permute.xlu0 0
          %563 = vperm.xlu0 %562, %v553
          %v564 = vpop.permute.xlu0 %563
          %567 = vset.pattern.permute.xlu0 0
          %568 = vperm.xlu0 %567, %v554
          %v569 = vpop.permute.xlu0 %568
          %572 = vset.pattern.permute.xlu0 0
          %573 = vperm.xlu0 %572, %v555
          %v574 = vpop.permute.xlu0 %573
          %v576 = vmul.f32 %v354, %v559
          %v577 = vmul.f32 %v355, %v564
          %v578 = vmul.f32 %v356, %v569
          %v579 = vmul.f32 %v357, %v574
          %v580 = vld [vmem:[#allocation7] sm:$0xff]
          %v581 = vld [vmem:[#allocation7 + $0x8] sm:$0xff]
          %v582 = vld [vmem:[#allocation7 + $0x10] sm:$0xff]
          %v583 = vld [vmem:[#allocation7 + $0x18] sm:$0xff]
          %585 = vset.pattern.permute.xlu0 0
          %586 = vperm.xlu0 %585, %v580
          %v587 = vpop.permute.xlu0 %586
          %590 = vset.pattern.permute.xlu0 0
          %591 = vperm.xlu0 %590, %v581
          %v592 = vpop.permute.xlu0 %591
          %595 = vset.pattern.permute.xlu0 0
          %596 = vperm.xlu0 %595, %v582
          %v597 = vpop.permute.xlu0 %596
          %600 = vset.pattern.permute.xlu0 0
          %601 = vperm.xlu0 %600, %v583
          %v602 = vpop.permute.xlu0 %601
          %v604 = vadd.f32 %v576, %v587
          %v605 = vadd.f32 %v577, %v592
          %v606 = vadd.f32 %v578, %v597
          %v607 = vadd.f32 %v579, %v602
          %v608 = vld [vmem:[%s2] sm:$0xff]
          %v609 = vld [vmem:[%s2 + $0x8] sm:$0xff]
          %v610 = vld [vmem:[%s2 + $0x10] sm:$0xff]
          %v611 = vld [vmem:[%s2 + $0x18] sm:$0xff]
          %612 = vset.pattern.permute.xlu0 3
          %613 = vperm.xlu0 %612, %v225
          %v614 = vpop.permute.xlu0 %613
          %616 = vset.pattern.permute.xlu0 3
          %617 = vperm.xlu0 %616, %v226
          %v618 = vpop.permute.xlu0 %617
          %620 = vset.pattern.permute.xlu0 3
          %621 = vperm.xlu0 %620, %v227
          %v622 = vpop.permute.xlu0 %621
          %624 = vset.pattern.permute.xlu0 3
          %625 = vperm.xlu0 %624, %v228
          %v626 = vpop.permute.xlu0 %625
          %vm628 = vcmask 261120
          %v630 = vsel %vm628, %v608, 0
          %v633 = vsel %vm628, %v609, 0
          %v636 = vsel %vm628, %v610, 0
          %v639 = vsel %vm628, %v611, 0
          %641 = vmatprep.subr.mxu0 0.0
          %642 = vmatpush1.msra.mxu0 0.0
          %643 = vmatprep.subr.mxu0 0.0
          %644 = vmatpush1.msra.mxu0 0.0
          %645 = vmatprep.subr.mxu0 0.0
          %646 = vmatpush1.msra.mxu0 0.0
          %647 = vmatprep.subr.mxu0 0.0
          %648 = vmatpush1.msra.mxu0 0.0
          %649 = vmatprep.subr.mxu0 0.0
          %650 = vmatpush1.msra.mxu0 0.0
          %651 = vmatprep.subr.mxu0 0.0
          %652 = vmatpush1.msra.mxu0 0.0
          %653 = vmatprep.subr.mxu0 0.0
          %654 = vmatpush1.msra.mxu0 0.0
          %655 = vmatprep.subr.mxu0 0.0
          %656 = vmatpush1.msra.mxu0 0.0
          %657 = vmatprep.subr.mxu0 0.0
          %658 = vmatpush1.msra.mxu0 0.0
          %659 = vmatprep.subr.mxu0 0.0
          %660 = vmatpush1.msra.mxu0 0.0
          %661 = vmatprep.subr.mxu0 0.0
          %662 = vmatpush1.msra.mxu0 0.0
          %663 = vmatprep.subr.mxu0 0.0
          %664 = vmatpush1.msra.mxu0 0.0
          %665 = vmatprep.subr.mxu0 0.0
          %666 = vmatpush1.msra.mxu0 %v607
          %667 = vmatprep.subr.mxu0 0.0
          %668 = vmatpush1.msra.mxu0 %v606
          %669 = vmatprep.subr.mxu0 0.0
          %670 = vmatpush1.msra.mxu0 %v605
          %671 = vmatprep.subr.mxu0 0.0
          %672 = vmatpush1.msra.mxu0 %v604
          %673 = vmatprep.subr.mxu0 0.0
          %674 = vmatpush2.msra.mxu0 0.0
          %675 = vmatprep.subr.mxu0 0.0
          %676 = vmatpush2.msra.mxu0 0.0
          %677 = vmatprep.subr.mxu0 0.0
          %678 = vmatpush2.msra.mxu0 0.0
          %679 = vmatprep.subr.mxu0 0.0
          %680 = vmatpush2.msra.mxu0 0.0
          %681 = vmatprep.subr.mxu0 0.0
          %682 = vmatpush2.msra.mxu0 0.0
          %683 = vmatprep.subr.mxu0 0.0
          %684 = vmatpush2.msra.mxu0 0.0
          %685 = vmatprep.subr.mxu0 0.0
          %686 = vmatpush2.msra.mxu0 0.0
          %687 = vmatprep.subr.mxu0 0.0
          %688 = vmatpush2.msra.mxu0 0.0
          %689 = vmatprep.subr.mxu0 0.0
          %690 = vmatpush2.msra.mxu0 0.0
          %691 = vmatprep.subr.mxu0 0.0
          %692 = vmatpush2.msra.mxu0 0.0
          %693 = vmatprep.subr.mxu0 0.0
          %694 = vmatpush2.msra.mxu0 0.0
          %695 = vmatprep.subr.mxu0 0.0
          %696 = vmatpush2.msra.mxu0 0.0
          %697 = vmatprep.subr.mxu0 0.0
          %698 = vmatpush2.msra.mxu0 0.0
          %699 = vmatprep.subr.mxu0 0.0
          %700 = vmatpush2.msra.mxu0 0.0
          %701 = vmatprep.subr.mxu0 0.0
          %702 = vmatpush2.msra.mxu0 0.0
          %703 = vmatprep.subr.mxu0 0.0
          %704 = vmatpush2.msra.mxu0 0.0
          %705 = vmatprep.mubr.f32.mxu0 0.0
          %706 = vmatmul.mubr.f32.gmra.mxu0 %v630
          %v707 = vpop.f32.mrf.mxu0
          %v708 = vadd.f32 %v614, %v707
          %v709 = vpop.f32.mrf.mxu0
          %710 = vmatprep.mubr.f32.mxu0 0.0
          %711 = vmatmul.mubr.f32.gmra.mxu0 %v633
          %v712 = vpop.f32.mrf.mxu0
          %v713 = vadd.f32 %v618, %v712
          %v714 = vpop.f32.mrf.mxu0
          %715 = vmatprep.mubr.f32.mxu0 0.0
          %716 = vmatmul.mubr.f32.gmra.mxu0 %v636
          %v717 = vpop.f32.mrf.mxu0
          %v718 = vadd.f32 %v622, %v717
          %v719 = vpop.f32.mrf.mxu0
          %720 = vmatprep.mubr.f32.mxu0 0.0
          %721 = vmatmul.mubr.f32.gmra.mxu0 %v639
          %v722 = vpop.f32.mrf.mxu0
          %v723 = vadd.f32 %v626, %v722
          %v724 = vpop.f32.mrf.mxu0
          %725 = vdwg.mxu0
          %v726 = vtanh.pop %v708
          %v727 = vtanh.pop %v713
          %v728 = vtanh.pop %v718
          %v729 = vtanh.pop %v723
          %p730 = scmp.eq.s32.totalorder %s21, 1
          // Predicated region
          $region57: #{tpu_custom_call.1} parent=55 // pred_check
            %p731 = pneg %p730
          $region58: #{tpu_custom_call.1} parent=55 // pred_check_branch
            %733 = sbr.rel (%p731) target = $region60
          $region59: #{tpu_custom_call.1} parent=55 // pred_region
            %p734 = scmp.eq.s32.totalorder %s22, 0
            // Predicated region
            $region61: #{tpu_custom_call.1} parent=59 // pred_check
              %p735 = pneg %p734
            $region62: #{tpu_custom_call.1} parent=59 // pred_check_branch
              %737 = sbr.rel (%p735) target = $region64
            $region63: #{tpu_custom_call.1} parent=59 // pred_region
              %vm738 = vcmask 7168
              %739 = vst.msk [vmem:[#allocation4] sm:$0xff] %vm738, 0.0
              %740 = vst.msk [vmem:[#allocation4 + $0x8] sm:$0xff] %vm738, 0.0
              %741 = vst.msk [vmem:[#allocation4 + $0x10] sm:$0xff] %vm738, 0.0
              %742 = vst.msk [vmem:[#allocation4 + $0x18] sm:$0xff] %vm738, 0.0
              %743 = vst.msk [vmem:[#allocation5] sm:$0xff] %vm738, 0.0
              %744 = vst.msk [vmem:[#allocation5 + $0x8] sm:$0xff] %vm738, 0.0
              %745 = vst.msk [vmem:[#allocation5 + $0x10] sm:$0xff] %vm738, 0.0
              %746 = vst.msk [vmem:[#allocation5 + $0x18] sm:$0xff] %vm738, 0.0
            $region64: #{tpu_custom_call.1} parent=59 // pred_fallthru
              _
            %v747 = vld [vmem:[#allocation4] sm:$0xff]
            %v748 = vld [vmem:[#allocation4 + $0x8] sm:$0xff]
            %v749 = vld [vmem:[#allocation4 + $0x10] sm:$0xff]
            %v750 = vld [vmem:[#allocation4 + $0x18] sm:$0xff]
            %vm751 = vcmask 64512
            %v752 = vsel %vm751, %v726, 0.0
            %753 = vadd.xlane.f32.xlu0 %v752
            %v754 = vpop.xlane.xlu0 %753
            %v755 = vsel %vm751, %v727, 0.0
            %756 = vadd.xlane.f32.xlu0 %v755
            %v757 = vpop.xlane.xlu0 %756
            %v758 = vsel %vm751, %v728, 0.0
            %759 = vadd.xlane.f32.xlu0 %v758
            %v760 = vpop.xlane.xlu0 %759
            %v761 = vsel %vm751, %v729, 0.0
            %762 = vadd.xlane.f32.xlu0 %v761
            %v763 = vpop.xlane.xlu0 %762
            %v764 = vadd.f32 %v747, %v754
            %v765 = vadd.f32 %v748, %v757
            %v766 = vadd.f32 %v749, %v760
            %v767 = vadd.f32 %v750, %v763
            %vm768 = vcmask 7168
            %769 = vst.msk [vmem:[#allocation4] sm:$0xff] %vm768, %v764
            %770 = vst.msk [vmem:[#allocation4 + $0x8] sm:$0xff] %vm768, %v765
            %771 = vst.msk [vmem:[#allocation4 + $0x10] sm:$0xff] %vm768, %v766
            %772 = vst.msk [vmem:[#allocation4 + $0x18] sm:$0xff] %vm768, %v767
            %v773 = vld [vmem:[#allocation5] sm:$0xff]
            %v774 = vld [vmem:[#allocation5 + $0x8] sm:$0xff]
            %v775 = vld [vmem:[#allocation5 + $0x10] sm:$0xff]
            %v776 = vld [vmem:[#allocation5 + $0x18] sm:$0xff]
            %v777 = vmul.f32 %v726, %v726
            %v778 = vmul.f32 %v727, %v727
            %v779 = vmul.f32 %v728, %v728
            %v780 = vmul.f32 %v729, %v729
            %v781 = vsel %vm751, %v777, 0.0
            %782 = vadd.xlane.f32.xlu0 %v781
            %v783 = vpop.xlane.xlu0 %782
            %v784 = vsel %vm751, %v778, 0.0
            %785 = vadd.xlane.f32.xlu0 %v784
            %v786 = vpop.xlane.xlu0 %785
            %v787 = vsel %vm751, %v779, 0.0
            %788 = vadd.xlane.f32.xlu0 %v787
            %v789 = vpop.xlane.xlu0 %788
            %v790 = vsel %vm751, %v780, 0.0
            %791 = vadd.xlane.f32.xlu0 %v790
            %v792 = vpop.xlane.xlu0 %791
            %v793 = vadd.f32 %v773, %v783
            %v794 = vadd.f32 %v774, %v786
            %v795 = vadd.f32 %v775, %v789
            %v796 = vadd.f32 %v776, %v792
            %797 = vst.msk [vmem:[#allocation5] sm:$0xff] %vm768, %v793
            %798 = vst.msk [vmem:[#allocation5 + $0x8] sm:$0xff] %vm768, %v794
            %799 = vst.msk [vmem:[#allocation5 + $0x10] sm:$0xff] %vm768, %v795
            %800 = vst.msk [vmem:[#allocation5 + $0x18] sm:$0xff] %vm768, %v796
            // Predicated region
            $region65: #{tpu_custom_call.1} parent=59 // pred_check
              %p801 = pneg %p734
            $region66: #{tpu_custom_call.1} parent=59 // pred_check_branch
              %803 = sbr.rel (%p801) target = $region68
            $region67: #{tpu_custom_call.1} parent=59 // pred_region
              %v804 = vld [vmem:[#allocation4] sm:$0xff]
              %v805 = vld [vmem:[#allocation4 + $0x8] sm:$0xff]
              %v806 = vld [vmem:[#allocation4 + $0x10] sm:$0xff]
              %v807 = vld [vmem:[#allocation4 + $0x18] sm:$0xff]
              %v808 = vmul.f32 %v804, 0.125
              %v809 = vmul.f32 %v805, 0.125
              %v810 = vmul.f32 %v806, 0.125
              %v811 = vmul.f32 %v807, 0.125
              %v812 = vld [vmem:[#allocation5] sm:$0xff]
              %v813 = vld [vmem:[#allocation5 + $0x8] sm:$0xff]
              %v814 = vld [vmem:[#allocation5 + $0x10] sm:$0xff]
              %v815 = vld [vmem:[#allocation5 + $0x18] sm:$0xff]
              %v816 = vmul.f32 %v812, 0.125
              %v817 = vmul.f32 %v813, 0.125
              %v818 = vmul.f32 %v814, 0.125
              %v819 = vmul.f32 %v815, 0.125
              %v820 = vmul.f32 %v808, %v808
              %v821 = vmul.f32 %v809, %v809
              %v822 = vmul.f32 %v810, %v810
              %v823 = vmul.f32 %v811, %v811
              %v824 = vsub.f32 %v816, %v820
              %v825 = vsub.f32 %v817, %v821
              %v826 = vsub.f32 %v818, %v822
              %v827 = vsub.f32 %v819, %v823
              %v828 = vadd.f32 %v824, 1e-05
              %v829 = vadd.f32 %v825, 1e-05
              %v830 = vadd.f32 %v826, 1e-05
              %v831 = vadd.f32 %v827, 1e-05
              %v832 = vrsqrt.pop %v828
              %v833 = vrsqrt.pop %v829
              %v834 = vrsqrt.pop %v830
              %v835 = vrsqrt.pop %v831
              %840 = vrot.lane.b32.xlu0 %v832, 4
              %v841 = vpop.permute.xlu0 %840
              %842 = vrot.lane.b32.xlu0 %v833, 4
              %v843 = vpop.permute.xlu0 %842
              %844 = vrot.lane.b32.xlu0 %v834, 4
              %v845 = vpop.permute.xlu0 %844
              %846 = vrot.lane.b32.xlu0 %v835, 4
              %v847 = vpop.permute.xlu0 %846
              %v852 = vmul.f32 %v225, %v841
              %v853 = vmul.f32 %v226, %v843
              %v854 = vmul.f32 %v227, %v845
              %v855 = vmul.f32 %v228, %v847
              %860 = vrot.lane.b32.xlu0 %v852, 124
              %v861 = vpop.permute.xlu0 %860
              %862 = vrot.lane.b32.xlu0 %v853, 124
              %v863 = vpop.permute.xlu0 %862
              %864 = vrot.lane.b32.xlu0 %v854, 124
              %v865 = vpop.permute.xlu0 %864
              %866 = vrot.lane.b32.xlu0 %v855, 124
              %v867 = vpop.permute.xlu0 %866
              %872 = vst.msk [vmem:[#allocation8] sm:$0xff] %vm768, %v861
              %873 = vst.msk [vmem:[#allocation8 + $0x8] sm:$0xff] %vm768, %v863
              %874 = vst.msk [vmem:[#allocation8 + $0x10] sm:$0xff] %vm768, %v865
              %875 = vst.msk [vmem:[#allocation8 + $0x18] sm:$0xff] %vm768, %v867
              %v876 = vmul.f32 %v808, %v861
              %v877 = vmul.f32 %v809, %v863
              %v878 = vmul.f32 %v810, %v865
              %v879 = vmul.f32 %v811, %v867
              %884 = vrot.lane.b32.xlu0 %v876, 5
              %v885 = vpop.permute.xlu0 %884
              %886 = vrot.lane.b32.xlu0 %v877, 5
              %v887 = vpop.permute.xlu0 %886
              %888 = vrot.lane.b32.xlu0 %v878, 5
              %v889 = vpop.permute.xlu0 %888
              %890 = vrot.lane.b32.xlu0 %v879, 5
              %v891 = vpop.permute.xlu0 %890
              %v896 = vsub.f32 %v225, %v885
              %v897 = vsub.f32 %v226, %v887
              %v898 = vsub.f32 %v227, %v889
              %v899 = vsub.f32 %v228, %v891
              %904 = vrot.lane.b32.xlu0 %v896, 123
              %v905 = vpop.permute.xlu0 %904
              %906 = vrot.lane.b32.xlu0 %v897, 123
              %v907 = vpop.permute.xlu0 %906
              %908 = vrot.lane.b32.xlu0 %v898, 123
              %v909 = vpop.permute.xlu0 %908
              %910 = vrot.lane.b32.xlu0 %v899, 123
              %v911 = vpop.permute.xlu0 %910
              %916 = vst.msk [vmem:[#allocation9] sm:$0xff] %vm768, %v905
              %917 = vst.msk [vmem:[#allocation9 + $0x8] sm:$0xff] %vm768, %v907
              %918 = vst.msk [vmem:[#allocation9 + $0x10] sm:$0xff] %vm768, %v909
              %919 = vst.msk [vmem:[#allocation9 + $0x18] sm:$0xff] %vm768, %v911
            $region68: #{tpu_custom_call.1} parent=59 // pred_fallthru
              _
          $region60: #{tpu_custom_call.1} parent=55 // pred_fallthru
            _
          %p920 = scmp.eq.s32.totalorder %s21, 2
          // Predicated region
          $region69: #{tpu_custom_call.1} parent=55 // pred_check
            %p921 = pneg %p920
          $region70: #{tpu_custom_call.1} parent=55 // pred_check_branch
            %923 = sbr.rel (%p921) target = $region72
          $region71: #{tpu_custom_call.1} parent=55 // pred_region
            %v924 = vld [vmem:[#allocation8] sm:$0xff]
            %v925 = vld [vmem:[#allocation8 + $0x8] sm:$0xff]
            %v926 = vld [vmem:[#allocation8 + $0x10] sm:$0xff]
            %v927 = vld [vmem:[#allocation8 + $0x18] sm:$0xff]
            %929 = vset.pattern.permute.xlu0 0
            %930 = vperm.xlu0 %929, %v924
            %v931 = vpop.permute.xlu0 %930
            %934 = vset.pattern.permute.xlu0 0
            %935 = vperm.xlu0 %934, %v925
            %v936 = vpop.permute.xlu0 %935
            %939 = vset.pattern.permute.xlu0 0
            %940 = vperm.xlu0 %939, %v926
            %v941 = vpop.permute.xlu0 %940
            %944 = vset.pattern.permute.xlu0 0
            %945 = vperm.xlu0 %944, %v927
            %v946 = vpop.permute.xlu0 %945
            %v948 = vmul.f32 %v726, %v931
            %v949 = vmul.f32 %v727, %v936
            %v950 = vmul.f32 %v728, %v941
            %v951 = vmul.f32 %v729, %v946
            %v952 = vld [vmem:[#allocation9] sm:$0xff]
            %v953 = vld [vmem:[#allocation9 + $0x8] sm:$0xff]
            %v954 = vld [vmem:[#allocation9 + $0x10] sm:$0xff]
            %v955 = vld [vmem:[#allocation9 + $0x18] sm:$0xff]
            %957 = vset.pattern.permute.xlu0 0
            %958 = vperm.xlu0 %957, %v952
            %v959 = vpop.permute.xlu0 %958
            %962 = vset.pattern.permute.xlu0 0
            %963 = vperm.xlu0 %962, %v953
            %v964 = vpop.permute.xlu0 %963
            %967 = vset.pattern.permute.xlu0 0
            %968 = vperm.xlu0 %967, %v954
            %v969 = vpop.permute.xlu0 %968
            %972 = vset.pattern.permute.xlu0 0
            %973 = vperm.xlu0 %972, %v955
            %v974 = vpop.permute.xlu0 %973
            %v976 = vadd.f32 %v948, %v959
            %v977 = vadd.f32 %v949, %v964
            %v978 = vadd.f32 %v950, %v969
            %v979 = vadd.f32 %v951, %v974
            %v980 = vld [vmem:[%s3] sm:$0x1]
            %982 = vset.pattern.permute.xlu0 6
            %983 = vperm.xlu0 %982, %v229
            %v984 = vpop.permute.xlu0 %983
            %v987 = vsel %vm628, %v980, 0
            %989 = vmatprep.subr.mxu0 0.0
            %990 = vmatpush1.msra.mxu0 0.0
            %991 = vmatprep.subr.mxu0 0.0
            %992 = vmatpush1.msra.mxu0 0.0
            %993 = vmatprep.subr.mxu0 0.0
            %994 = vmatpush1.msra.mxu0 0.0
            %995 = vmatprep.subr.mxu0 0.0
            %996 = vmatpush1.msra.mxu0 0.0
            %997 = vmatprep.subr.mxu0 0.0
            %998 = vmatpush1.msra.mxu0 0.0
            %999 = vmatprep.subr.mxu0 0.0
            %1000 = vmatpush1.msra.mxu0 0.0
            %1001 = vmatprep.subr.mxu0 0.0
            %1002 = vmatpush1.msra.mxu0 0.0
            %1003 = vmatprep.subr.mxu0 0.0
            %1004 = vmatpush1.msra.mxu0 0.0
            %1005 = vmatprep.subr.mxu0 0.0
            %1006 = vmatpush1.msra.mxu0 0.0
            %1007 = vmatprep.subr.mxu0 0.0
            %1008 = vmatpush1.msra.mxu0 0.0
            %1009 = vmatprep.subr.mxu0 0.0
            %1010 = vmatpush1.msra.mxu0 0.0
            %1011 = vmatprep.subr.mxu0 0.0
            %1012 = vmatpush1.msra.mxu0 0.0
            %1013 = vmatprep.subr.mxu0 0.0
            %1014 = vmatpush1.msra.mxu0 %v979
            %1015 = vmatprep.subr.mxu0 0.0
            %1016 = vmatpush1.msra.mxu0 %v978
            %1017 = vmatprep.subr.mxu0 0.0
            %1018 = vmatpush1.msra.mxu0 %v977
            %1019 = vmatprep.subr.mxu0 0.0
            %1020 = vmatpush1.msra.mxu0 %v976
            %1021 = vmatprep.subr.mxu0 0.0
            %1022 = vmatpush2.msra.mxu0 0.0
            %1023 = vmatprep.subr.mxu0 0.0
            %1024 = vmatpush2.msra.mxu0 0.0
            %1025 = vmatprep.subr.mxu0 0.0
            %1026 = vmatpush2.msra.mxu0 0.0
            %1027 = vmatprep.subr.mxu0 0.0
            %1028 = vmatpush2.msra.mxu0 0.0
            %1029 = vmatprep.subr.mxu0 0.0
            %1030 = vmatpush2.msra.mxu0 0.0
            %1031 = vmatprep.subr.mxu0 0.0
            %1032 = vmatpush2.msra.mxu0 0.0
            %1033 = vmatprep.subr.mxu0 0.0
            %1034 = vmatpush2.msra.mxu0 0.0
            %1035 = vmatprep.subr.mxu0 0.0
            %1036 = vmatpush2.msra.mxu0 0.0
            %1037 = vmatprep.subr.mxu0 0.0
            %1038 = vmatpush2.msra.mxu0 0.0
            %1039 = vmatprep.subr.mxu0 0.0
            %1040 = vmatpush2.msra.mxu0 0.0
            %1041 = vmatprep.subr.mxu0 0.0
            %1042 = vmatpush2.msra.mxu0 0.0
            %1043 = vmatprep.subr.mxu0 0.0
            %1044 = vmatpush2.msra.mxu0 0.0
            %1045 = vmatprep.subr.mxu0 0.0
            %1046 = vmatpush2.msra.mxu0 0.0
            %1047 = vmatprep.subr.mxu0 0.0
            %1048 = vmatpush2.msra.mxu0 0.0
            %1049 = vmatprep.subr.mxu0 0.0
            %1050 = vmatpush2.msra.mxu0 0.0
            %1051 = vmatprep.subr.mxu0 0.0
            %1052 = vmatpush2.msra.mxu0 0.0
            %1053 = vmatprep.mubr.f32.mxu0 0.0
            %1054 = vmatmul.mubr.f32.gmra.mxu0 %v987
            %v1055 = vpop.f32.mrf.mxu0
            %v1056 = vadd.f32 %v984, %v1055
            %v1057 = vpop.f32.mrf.mxu0
            %1058 = vdwg.mxu0
            %v1059 = vmul.f32 %v1056, 0.5
            %v1060 = vtanh.pop %v1059
            %v1061 = vadd.f32 %v1060, 1.0
            %v1062 = vmul.f32 %v1061, 0.5
            %vm1063 = vcmask 57344
            %1064 = vst.msk [vmem:[#allocation10] sm:$0x1] %vm1063, %v1062
          $region72: #{tpu_custom_call.1} parent=55 // pred_fallthru
            _
        $region56: #{tpu_custom_call.1} parent=39 // pred_fallthru
          _
        // Predicated region
        $region73: #{tpu_custom_call.1} parent=39 // pred_check
          %p1065 = pneg %p157
        $region74: #{tpu_custom_call.1} parent=39 // pred_check_branch
          %1067 = sbr.rel (%p1065) target = $region76
        $region75: #{tpu_custom_call.1} parent=39 // pred_region
          %s1069 = ssub.s32 16, 16
          %1070 = vsyncadd [#allocation11], %s1069
          %s1071 = smul.addr %s22, 16
          %s1072 = scalar_lea.hbm %s5, %s1071
          %s1074 = sshll.u32 [#allocation10], 4
          %s1075 = int_to_ptr.vmem [resolvable:$true] %s1074
          %1077 = dma.vmem_to_hbm [thread:$0]  %s1075, 16, %s1072, [#allocation11]
        $region76: #{tpu_custom_call.1} parent=39 // pred_fallthru
          _
        // Predicated region
        $region77: #{tpu_custom_call.1} parent=39 // pred_check
          %p1078 = pneg %p157
        $region78: #{tpu_custom_call.1} parent=39 // pred_check_branch
          %1080 = sbr.rel (%p1078) target = $region80
        $region79: #{tpu_custom_call.1} parent=39 // pred_region
          %1081 = dma.done [#allocation11], 16
        $region80: #{tpu_custom_call.1} parent=39 // pred_fallthru
          _
      $region40: #{tpu_custom_call.1} parent=5 // pred_fallthru
        _
      %p1082 = scmp.le.s32.totalorder 2, %s12
      // Predicated region
      $region81: #{tpu_custom_call.1} parent=5 // pred_check
        %p1083 = pneg %p1082
      $region82: #{tpu_custom_call.1} parent=5 // pred_check_branch
        %1085 = sbr.rel (%p1083) target = $region84
      $region83: #{tpu_custom_call.1} parent=5 // pred_region
        %s1086 = ssub.s32 %s12, 2
      $region84: #{tpu_custom_call.1} parent=5 // pred_fallthru
        _
    $region6: #{tpu_custom_call.1} parent=1 // loop_footer
      %s16 = sadd.s32 1, %s12
    $region7: #{tpu_custom_call.1} parent=1 // loop_footer_branch
      %11 = sbr.rel target = $region3
    $region8: #{tpu_custom_call.1} parent=1 // loop_exit
      _
    %1087 = vsyncpa [#allocation11], 1
    %s1088 = scalar_lea.sflag [#allocation11], 1
    %1089 = vsyncpa %s1088, 1

</llo_original>
